<compile_context>
chip_gen: v5e
topology: v5e:2x2
jax: 0.10.0
libtpu: 0.0.40
codegen_flags: <defaults>
</compile_context>

<pallas_src>
import jax
import jax.numpy as jnp
from jax import lax
from jax.experimental import pallas as pl
from jax.experimental.pallas import tpu as pltpu


def qnetwork_kernel(x_ref, w1_ref, b1_ref, w2_ref, b2_ref, w3_ref, b3_ref, out_ref):
    # x_ref: (tile_b, S) batch-major (native layout).  w*: (out, in) PyTorch layout,
    # already in the matmul dtype.  b*: (out, 1) f32.  out_ref: (A, tile_b).
    x = x_ref[...]
    # h1^T = w1 @ x^T: contract both feature axes; MXU handles the transposed RHS
    # and S is tiny so any in-VMEM shuffle is negligible.
    h1 = lax.dot_general(w1_ref[...], x, (((1,), (1,)), ((), ())),
                         preferred_element_type=jnp.float32) + b1_ref[...]
    h1 = jnp.maximum(h1, 0.0)
    h2 = jnp.dot(w2_ref[...], h1.astype(w2_ref.dtype),
                 preferred_element_type=jnp.float32) + b2_ref[...]
    h2 = jnp.maximum(h2, 0.0)
    h3 = jnp.dot(w3_ref[...], h2.astype(w3_ref.dtype),
                 preferred_element_type=jnp.float32) + b3_ref[...]
    # Feature-major, lane-dense store (batch on the 128-wide lane axis).
    out_ref[...] = jnp.maximum(h3, 0.0).astype(out_ref.dtype)


def qnetwork_forward(x, params, *, tile_b=32768, matmul_dtype=jnp.float32,
                     feature_major_output=False, x_buffers=2):
    """x: (B, state_size). params: PyTorch-layout w1,b1,w2,b2,w3,b3.

    Returns (B, action_size) f32 (or (action_size, B) if feature_major_output).
    """
    w1, b1, w2, b2, w3, b3 = (params[k] for k in ("w1", "b1", "w2", "b2", "w3", "b3"))
    B, S = x.shape
    A = w3.shape[0]

    if B <= tile_b:
        tile_b = B                         # single block == full array dims
    else:
        assert tile_b % 128 == 0, "tile_b must be a multiple of 128"
    grid = (pl.cdiv(B, tile_b),)           # ragged last block is masked by Pallas

    # Cast the streamed input (and the tiny pinned weights) BEFORE pallas_call so
    # the bf16 path actually reduces the DMA'd bytes; biases stay f32.
    x_in = x if x.dtype == matmul_dtype else x.astype(matmul_dtype)
    w1c, w2c, w3c = (w.astype(matmul_dtype) for w in (w1, w2, w3))

    itemsize = jnp.dtype(matmul_dtype).itemsize
    flops = 2 * B * (S * 8 + 8 * 16 + 16 * A)
    bytes_accessed = (B * S * itemsize + B * A * 4
                      + sum(w.size * itemsize for w in (w1c, w2c, w3c))
                      + sum(bb.size * 4 for bb in (b1, b2, b3)))

    # Deepen x-stream pipelining only if explicitly requested (e.g. exposed DMA
    # gaps in xprof); the default 2-deep pipeline is used otherwise.
    x_spec_kwargs = {}
    if x_buffers != 2:
        x_spec_kwargs["pipeline_mode"] = pl.Buffered(x_buffers)
    x_spec = pl.BlockSpec((tile_b, S), lambda i: (i, 0), **x_spec_kwargs)

    def pinned(arr):
        # Constant index_map -> block stays resident in VMEM across grid steps.
        return pl.BlockSpec(arr.shape, lambda i: (0, 0))

    out_t = pl.pallas_call(
        qnetwork_kernel,
        out_shape=jax.ShapeDtypeStruct((A, B), jnp.float32),
        grid=grid,
        in_specs=[
            x_spec,                         # x tile, pipelined, native layout
            pinned(w1c), pinned(b1),
            pinned(w2c), pinned(b2),
            pinned(w3c), pinned(b3),
        ],
        out_specs=pl.BlockSpec((A, tile_b), lambda i: (0, i)),
        compiler_params=pltpu.CompilerParams(
            dimension_semantics=("parallel",)),
        cost_estimate=pl.CostEstimate(
            flops=flops, transcendentals=0, bytes_accessed=bytes_accessed),
    )(x_in, w1c, b1, w2c, b2, w3c, b3)

    if feature_major_output:
        return out_t                        # (A, B): skip the final transpose pass
    return out_t.T                          # (B, A): matches the PyTorch module


def init_params(key, state_size, action_size):
    """nn.Linear-style init; weights in PyTorch (out, in) layout, biases (out, 1)."""
    def linear(k, fan_in, fan_out):
        kw, kb = jax.random.split(k)
        bound = 1.0 / jnp.sqrt(jnp.float32(fan_in))
        w = jax.random.uniform(kw, (fan_out, fan_in), jnp.float32, -bound, bound)
        b = jax.random.uniform(kb, (fan_out, 1), jnp.float32, -bound, bound)
        return w, b

    k1, k2, k3 = jax.random.split(key, 3)
    w1, b1 = linear(k1, state_size, 8)
    w2, b2 = linear(k2, 8, 16)
    w3, b3 = linear(k3, 16, action_size)
    return {"w1": w1, "b1": b1, "w2": w2, "b2": b2, "w3": w3, "b3": b3}


def reference_forward(x, p):
    # Matches the PyTorch module: ReLU after every layer, including fc3.
    h1 = jnp.maximum(x @ p["w1"].T + p["b1"].T, 0.0)
    h2 = jnp.maximum(h1 @ p["w2"].T + p["b2"].T, 0.0)
    return jnp.maximum(h2 @ p["w3"].T + p["b3"].T, 0.0)


if __name__ == "__main__":
    key = jax.random.PRNGKey(0)
    k_params, k_x1, k_x2 = jax.random.split(key, 3)

    state_size, action_size = 4, 2
    params = init_params(k_params, state_size, action_size)

    # 1) Small batch: single-block path (block == full array dims).
    x_small = jax.random.normal(k_x1, (8, state_size), jnp.float32)
    out_small = jax.block_until_ready(qnetwork_forward(x_small, params))
    ref_small = reference_forward(x_small, params)
    assert out_small.shape == (8, action_size)
    assert jnp.allclose(out_small, ref_small, atol=1e-5, rtol=1e-5), "small-batch mismatch"

    # 2) Larger ragged batch: multi-step grid + masked last block (no wrapper pad).
    x_big = jax.random.normal(k_x2, (260, state_size), jnp.float32)
    out_big = jax.block_until_ready(qnetwork_forward(x_big, params, tile_b=128))
    ref_big = reference_forward(x_big, params)
    assert out_big.shape == (260, action_size)
    assert jnp.allclose(out_big, ref_big, atol=1e-5, rtol=1e-5), "tiled-batch mismatch"

    # 3) bf16 matmul path: x + weights DMA'd at 2 B/elem, f32 accumulate/bias/ReLU.
    out_bf16 = jax.block_until_ready(
        qnetwork_forward(x_big, params, tile_b=128, matmul_dtype=jnp.bfloat16))
    assert out_bf16.shape == (260, action_size)
    assert jnp.allclose(out_bf16, ref_big, atol=1e-1, rtol=1e-1), "bf16 mismatch"

    print("KERNEL_OK")
</pallas_src>

<mosaic_0001>
module attributes {stable_mosaic.version = 11 : i64} {
  func.func @qnetwork_kernel(%arg0: i32, %arg1: memref<8x4xf32, #tpu.memory_space<vmem>>, %arg2: memref<8x4xf32, #tpu.memory_space<vmem>>, %arg3: memref<8x1xf32, #tpu.memory_space<vmem>>, %arg4: memref<16x8xf32, #tpu.memory_space<vmem>>, %arg5: memref<16x1xf32, #tpu.memory_space<vmem>>, %arg6: memref<2x16xf32, #tpu.memory_space<vmem>>, %arg7: memref<2x1xf32, #tpu.memory_space<vmem>>, %arg8: memref<2x8xf32, #tpu.memory_space<vmem>>) attributes {dimension_semantics = [#tpu.dimension_semantics<parallel>], iteration_bounds = array<i64: 1>, scalar_prefetch = 0 : i64, scratch_operands = 0 : i64, tpu.core_type = #tpu.core_type<tc>, window_params = [{transform_indices = @transform_0, window_bounds = array<i64: 8, 4>}, {pipeline_mode = #tpu.pipeline_mode<synchronous>, transform_indices = @transform_1, window_bounds = array<i64: 8, 4>}, {pipeline_mode = #tpu.pipeline_mode<synchronous>, transform_indices = @transform_2, window_bounds = array<i64: 8, 1>}, {pipeline_mode = #tpu.pipeline_mode<synchronous>, transform_indices = @transform_3, window_bounds = array<i64: 16, 8>}, {pipeline_mode = #tpu.pipeline_mode<synchronous>, transform_indices = @transform_4, window_bounds = array<i64: 16, 1>}, {pipeline_mode = #tpu.pipeline_mode<synchronous>, transform_indices = @transform_5, window_bounds = array<i64: 2, 16>}, {pipeline_mode = #tpu.pipeline_mode<synchronous>, transform_indices = @transform_6, window_bounds = array<i64: 2, 1>}, {transform_indices = @transform_7, window_bounds = array<i64: 2, 8>}]} {
    %c0 = arith.constant 0 : index
    %c0_0 = arith.constant 0 : index
    %0 = vector.load %arg1[%c0, %c0_0] : memref<8x4xf32, #tpu.memory_space<vmem>>, vector<8x4xf32>
    %c0_1 = arith.constant 0 : index
    %c0_2 = arith.constant 0 : index
    %1 = vector.load %arg2[%c0_1, %c0_2] : memref<8x4xf32, #tpu.memory_space<vmem>>, vector<8x4xf32>
    %cst = arith.constant dense<0.000000e+00> : vector<8x8xf32>
    %2 = tpu.matmul %1, %0, %cst {dimension_numbers = #tpu.dot_dimension_numbers<[1], [1], [0], [0], [0, 0, 1, 0], [], []>} : vector<8x4xf32>, vector<8x4xf32>, vector<8x8xf32> -> vector<8x8xf32>
    %c0_3 = arith.constant 0 : index
    %c0_4 = arith.constant 0 : index
    %3 = vector.load %arg3[%c0_3, %c0_4] : memref<8x1xf32, #tpu.memory_space<vmem>>, vector<8x1xf32>
    %4 = vector.broadcast %3 : vector<8x1xf32> to vector<8x8xf32>
    %5 = arith.addf %2, %4 : vector<8x8xf32>
    %cst_5 = arith.constant 0.000000e+00 : f32
    %6 = vector.broadcast %cst_5 : f32 to vector<8x8xf32>
    %7 = arith.maximumf %5, %6 : vector<8x8xf32>
    %c0_6 = arith.constant 0 : index
    %c0_7 = arith.constant 0 : index
    %8 = vector.load %arg4[%c0_6, %c0_7] : memref<16x8xf32, #tpu.memory_space<vmem>>, vector<16x8xf32>
    %cst_8 = arith.constant dense<0.000000e+00> : vector<16x8xf32>
    %9 = tpu.matmul %8, %7, %cst_8 {dimension_numbers = #tpu.dot_dimension_numbers<[1], [0], [0], [1], [0, 0, 1, 1], [], []>} : vector<16x8xf32>, vector<8x8xf32>, vector<16x8xf32> -> vector<16x8xf32>
    %c0_9 = arith.constant 0 : index
    %c0_10 = arith.constant 0 : index
    %10 = vector.load %arg5[%c0_9, %c0_10] : memref<16x1xf32, #tpu.memory_space<vmem>>, vector<16x1xf32>
    %11 = vector.broadcast %10 : vector<16x1xf32> to vector<16x8xf32>
    %12 = arith.addf %9, %11 : vector<16x8xf32>
    %cst_11 = arith.constant 0.000000e+00 : f32
    %13 = vector.broadcast %cst_11 : f32 to vector<16x8xf32>
    %14 = arith.maximumf %12, %13 : vector<16x8xf32>
    %c0_12 = arith.constant 0 : index
    %c0_13 = arith.constant 0 : index
    %15 = vector.load %arg6[%c0_12, %c0_13] : memref<2x16xf32, #tpu.memory_space<vmem>>, vector<2x16xf32>
    %cst_14 = arith.constant dense<0.000000e+00> : vector<2x8xf32>
    %16 = tpu.matmul %15, %14, %cst_14 {dimension_numbers = #tpu.dot_dimension_numbers<[1], [0], [0], [1], [0, 0, 1, 1], [], []>} : vector<2x16xf32>, vector<16x8xf32>, vector<2x8xf32> -> vector<2x8xf32>
    %c0_15 = arith.constant 0 : index
    %c0_16 = arith.constant 0 : index
    %17 = vector.load %arg7[%c0_15, %c0_16] : memref<2x1xf32, #tpu.memory_space<vmem>>, vector<2x1xf32>
    %18 = vector.broadcast %17 : vector<2x1xf32> to vector<2x8xf32>
    %19 = arith.addf %16, %18 : vector<2x8xf32>
    %cst_17 = arith.constant 0.000000e+00 : f32
    %20 = vector.broadcast %cst_17 : f32 to vector<2x8xf32>
    %21 = arith.maximumf %19, %20 : vector<2x8xf32>
    %c0_18 = arith.constant 0 : index
    %c0_19 = arith.constant 0 : index
    %22 = vector.load %arg8[%c0_18, %c0_19] : memref<2x8xf32, #tpu.memory_space<vmem>>, vector<2x8xf32>
    tpu.vector_store %arg8[%c0_18, %c0_19], %21 {strides = array<i32>} : memref<2x8xf32, #tpu.memory_space<vmem>>, vector<2x8xf32>,
    return
  }
  func.func @transform_0(%arg0: i32) -> (i32, i32) {
    %c0_i32 = arith.constant 0 : i32
    %c0_i32_0 = arith.constant 0 : i32
    return %arg0, %c0_i32 : i32, i32
  }
  func.func @transform_1(%arg0: i32) -> (i32, i32) {
    %c0_i32 = arith.constant 0 : i32
    %c0_i32_0 = arith.constant 0 : i32
    %c0_i32_1 = arith.constant 0 : i32
    return %c0_i32, %c0_i32_0 : i32, i32
  }
  func.func @transform_2(%arg0: i32) -> (i32, i32) {
    %c0_i32 = arith.constant 0 : i32
    %c0_i32_0 = arith.constant 0 : i32
    %c0_i32_1 = arith.constant 0 : i32
    return %c0_i32, %c0_i32_0 : i32, i32
  }
  func.func @transform_3(%arg0: i32) -> (i32, i32) {
    %c0_i32 = arith.constant 0 : i32
    %c0_i32_0 = arith.constant 0 : i32
    %c0_i32_1 = arith.constant 0 : i32
    return %c0_i32, %c0_i32_0 : i32, i32
  }
  func.func @transform_4(%arg0: i32) -> (i32, i32) {
    %c0_i32 = arith.constant 0 : i32
    %c0_i32_0 = arith.constant 0 : i32
    %c0_i32_1 = arith.constant 0 : i32
    return %c0_i32, %c0_i32_0 : i32, i32
  }
  func.func @transform_5(%arg0: i32) -> (i32, i32) {
    %c0_i32 = arith.constant 0 : i32
    %c0_i32_0 = arith.constant 0 : i32
    %c0_i32_1 = arith.constant 0 : i32
    return %c0_i32, %c0_i32_0 : i32, i32
  }
  func.func @transform_6(%arg0: i32) -> (i32, i32) {
    %c0_i32 = arith.constant 0 : i32
    %c0_i32_0 = arith.constant 0 : i32
    %c0_i32_1 = arith.constant 0 : i32
    return %c0_i32, %c0_i32_0 : i32, i32
  }
  func.func @transform_7(%arg0: i32) -> (i32, i32) {
    %c0_i32 = arith.constant 0 : i32
    %c0_i32_0 = arith.constant 0 : i32
    return %c0_i32, %arg0 : i32, i32
  }
}

</mosaic_0001>

<llo_original>
// kernel: tpu_custom_call.1
$region0: #{tpu_custom_call.1}
  #allocation0 [shape = 'u32[]', space=smem, size = 0x4, offset = 0x4, fixed_abs, tag = 'smem constant byte address 0x4 - core index']
  #allocation1 [shape = 'u32[72,128]{1,0:T(1,128)}', space=vmem, size = 0x9000, scoped, tag = 'internal scratch']
  %s0 = inlined_call_operand.vmem [shape: f32[8,4], index: 0, kind: input, shape index: {}]
  %s1 = inlined_call_operand.vmem [shape: f32[8,4], index: 1, kind: input, shape index: {}]
  %s2 = inlined_call_operand.vmem [shape: f32[8,1], index: 2, kind: input, shape index: {}]
  %s3 = inlined_call_operand.vmem [shape: f32[16,8], index: 3, kind: input, shape index: {}]
  %s4 = inlined_call_operand.vmem [shape: f32[16,1], index: 4, kind: input, shape index: {}]
  %s5 = inlined_call_operand.vmem [shape: f32[2,16], index: 5, kind: input, shape index: {}]
  %s6 = inlined_call_operand.vmem [shape: f32[2,1], index: 6, kind: input, shape index: {}]
  %s7 = inlined_call_operand.hbm [shape: f32[2,8], index: 7, kind: output, shape index: {}]
  %s8 = sld [smem:[#allocation0]]
  $region38: #{tpu_custom_call.1} parent=0
    _
  %s10 = ssub.s32 1, %s8
  %s11 = scalar_select 0, %s10, %s8
  $region1: #{tpu_custom_call.1} parent=0
    #allocation2 [shape = 'u8[1024]{0}', space=vmem, size = 0x400, scoped, tag = 'output window, operand 0, single buffered']
    #allocation3 [shape = 's32[1]{0}', space=sflag, size = 0x4, scoped, tag = 'scoped memory for tpu_custom_call.1']
    %12 = vsyncpa [#allocation3], 0
    // Predicated region
    $region2: #{tpu_custom_call.1} parent=1 // pred_check
      _
    $region3: #{tpu_custom_call.1} parent=1 // pred_check_branch
      %14 = sbr.rel (0) target = $region5
    $region4: #{tpu_custom_call.1} parent=1 // pred_region
      _
    $region5: #{tpu_custom_call.1} parent=1 // pred_fallthru
      _
    // Predicated region
    $region6: #{tpu_custom_call.1} parent=1 // pred_check
      _
    $region7: #{tpu_custom_call.1} parent=1 // pred_check_branch
      %16 = sbr.rel (0) target = $region9
    $region8: #{tpu_custom_call.1} parent=1 // pred_region
      _
    $region9: #{tpu_custom_call.1} parent=1 // pred_fallthru
      _
    // Predicated region
    $region10: #{tpu_custom_call.1} parent=1 // pred_check
      _
    $region11: #{tpu_custom_call.1} parent=1 // pred_check_branch
      %18 = sbr.rel (0) target = $region13
    $region12: #{tpu_custom_call.1} parent=1 // pred_region
      _
    $region13: #{tpu_custom_call.1} parent=1 // pred_fallthru
      _
    // Predicated region
    $region14: #{tpu_custom_call.1} parent=1 // pred_check
      _
    $region15: #{tpu_custom_call.1} parent=1 // pred_check_branch
      %20 = sbr.rel (0) target = $region17
    $region16: #{tpu_custom_call.1} parent=1 // pred_region
      _
    $region17: #{tpu_custom_call.1} parent=1 // pred_fallthru
      _
    // Predicated region
    $region18: #{tpu_custom_call.1} parent=1 // pred_check
      _
    $region19: #{tpu_custom_call.1} parent=1 // pred_check_branch
      %22 = sbr.rel (0) target = $region21
    $region20: #{tpu_custom_call.1} parent=1 // pred_region
      _
    $region21: #{tpu_custom_call.1} parent=1 // pred_fallthru
      _
    // Predicated region
    $region22: #{tpu_custom_call.1} parent=1 // pred_check
      _
    $region23: #{tpu_custom_call.1} parent=1 // pred_check_branch
      %24 = sbr.rel (0) target = $region25
    $region24: #{tpu_custom_call.1} parent=1 // pred_region
      _
    $region25: #{tpu_custom_call.1} parent=1 // pred_fallthru
      _
    // Predicated region
    $region26: #{tpu_custom_call.1} parent=1 // pred_check
      _
    $region27: #{tpu_custom_call.1} parent=1 // pred_check_branch
      %26 = sbr.rel (0) target = $region29
    $region28: #{tpu_custom_call.1} parent=1 // pred_region
      _
    $region29: #{tpu_custom_call.1} parent=1 // pred_fallthru
      _
    %v27 = vld [vmem:[%s0] sm:$0xff]
    %v28 = vld [vmem:[%s1] sm:$0xff]
    %v29 = vld [vmem:[%s2] sm:$0xff]
    %31 = vset.pattern.permute.xlu0 0
    %32 = vperm.xlu0 %31, %v29
    %v33 = vpop.permute.xlu0 %32
    %vm35 = vcmask 31744
    %v37 = vsel %vm35, %v28, 0
    %v40 = vsel %vm35, %v27, 0
    %42 = vmatpush.xpose.msra.mxu0 0.0
    %43 = vmatpush.xpose.msra.mxu0 0.0
    %44 = vmatpush.xpose.msra.mxu0 0.0
    %45 = vmatpush.xpose.msra.mxu0 0.0
    %46 = vmatpush.xpose.msra.mxu0 0.0
    %47 = vmatpush.xpose.msra.mxu0 0.0
    %48 = vmatpush.xpose.msra.mxu0 0.0
    %49 = vmatpush.xpose.msra.mxu0 0.0
    %50 = vmatpush.xpose.msra.mxu0 0.0
    %51 = vmatpush.xpose.msra.mxu0 0.0
    %52 = vmatpush.xpose.msra.mxu0 0.0
    %53 = vmatpush.xpose.msra.mxu0 0.0
    %54 = vmatpush.xpose.msra.mxu0 0.0
    %55 = vmatpush.xpose.msra.mxu0 0.0
    %56 = vmatpush.xpose.msra.mxu0 0.0
    %57 = vmatpush.xpose.msra.mxu0 %v40
    %58 = vmatmul.f32.gmra.mxu0 %v37
    %v59 = vpop.f32.mrf.mxu0
    %v60 = vadd.f32 %v33, %v59
    %61 = vdwg.mxu0
    %v62 = vmax.f32 %v60, 0.0
    %v63 = vld [vmem:[%s3] sm:$0xff]
    %v64 = vld [vmem:[%s3 + $0x8] sm:$0xff]
    %v65 = vld [vmem:[%s4] sm:$0xff]
    %v66 = vld [vmem:[%s4 + $0x8] sm:$0xff]
    %68 = vset.pattern.permute.xlu0 0
    %69 = vperm.xlu0 %68, %v65
    %v70 = vpop.permute.xlu0 %69
    %73 = vset.pattern.permute.xlu0 0
    %74 = vperm.xlu0 %73, %v66
    %v75 = vpop.permute.xlu0 %74
    %vm77 = vcmask 64512
    %v79 = vsel %vm77, %v63, 0
    %v82 = vsel %vm77, %v64, 0
    %84 = vmatpush.msra.mxu0 0.0
    %85 = vmatpush.msra.mxu0 0.0
    %86 = vmatpush.msra.mxu0 0.0
    %87 = vmatpush.msra.mxu0 0.0
    %88 = vmatpush.msra.mxu0 0.0
    %89 = vmatpush.msra.mxu0 0.0
    %90 = vmatpush.msra.mxu0 0.0
    %91 = vmatpush.msra.mxu0 0.0
    %92 = vmatpush.msra.mxu0 0.0
    %93 = vmatpush.msra.mxu0 0.0
    %94 = vmatpush.msra.mxu0 0.0
    %95 = vmatpush.msra.mxu0 0.0
    %96 = vmatpush.msra.mxu0 0.0
    %97 = vmatpush.msra.mxu0 0.0
    %98 = vmatpush.msra.mxu0 0.0
    %99 = vmatpush.msra.mxu0 %v62
    %100 = vmatmul.f32.gmra.mxu0 %v79
    %v101 = vpop.f32.mrf.mxu0
    %v102 = vadd.f32 %v70, %v101
    %103 = vmatmul.f32.gmra.mxu0 %v82
    %v104 = vpop.f32.mrf.mxu0
    %v105 = vadd.f32 %v75, %v104
    %106 = vdwg.mxu0
    %v107 = vmax.f32 %v102, 0.0
    %v108 = vmax.f32 %v105, 0.0
    %v109 = vld [vmem:[%s5] sm:$0x3]
    %v110 = vld [vmem:[%s6] sm:$0x3]
    %112 = vset.pattern.permute.xlu0 0
    %113 = vperm.xlu0 %112, %v110
    %v114 = vpop.permute.xlu0 %113
    %vm116 = vcmask 130048
    %v118 = vsel %vm116, %v109, 0
    %120 = vmatpush.msra.mxu0 0.0
    %121 = vmatpush.msra.mxu0 0.0
    %122 = vmatpush.msra.mxu0 0.0
    %123 = vmatpush.msra.mxu0 0.0
    %124 = vmatpush.msra.mxu0 0.0
    %125 = vmatpush.msra.mxu0 0.0
    %126 = vmatpush.msra.mxu0 0.0
    %127 = vmatpush.msra.mxu0 0.0
    %128 = vmatpush.msra.mxu0 0.0
    %129 = vmatpush.msra.mxu0 0.0
    %130 = vmatpush.msra.mxu0 0.0
    %131 = vmatpush.msra.mxu0 0.0
    %132 = vmatpush.msra.mxu0 0.0
    %133 = vmatpush.msra.mxu0 0.0
    %134 = vmatpush.msra.mxu0 %v108
    %135 = vmatpush.msra.mxu0 %v107
    %136 = vmatmul.f32.gmra.mxu0 %v118
    %v137 = vpop.f32.mrf.mxu0
    %v138 = vadd.f32 %v114, %v137
    %139 = vdwg.mxu0
    %v140 = vmax.f32 %v138, 0.0
    %vm141 = vcmask 58368
    %142 = vst.msk [vmem:[#allocation2] sm:$0x3] %vm141, %v140
    // Predicated region
    $region30: #{tpu_custom_call.1} parent=1 // pred_check
      _
    $region31: #{tpu_custom_call.1} parent=1 // pred_check_branch
      %144 = sbr.rel (0) target = $region33
    $region32: #{tpu_custom_call.1} parent=1 // pred_region
      %146 = vsyncadd [#allocation3], 0
      %s148 = sshll.u32 [#allocation2], 4
      %s149 = int_to_ptr.vmem [resolvable:$true] %s148
      %s150 = sshll.u32 %s7, 4
      %s151 = int_to_ptr.hbm [resolvable:$true] %s150
      %153 = dma.vmem_to_hbm [thread:$0]  %s149, 32, %s151, [#allocation3]
    $region33: #{tpu_custom_call.1} parent=1 // pred_fallthru
      _
    // Predicated region
    $region34: #{tpu_custom_call.1} parent=1 // pred_check
      _
    $region35: #{tpu_custom_call.1} parent=1 // pred_check_branch
      %155 = sbr.rel (0) target = $region37
    $region36: #{tpu_custom_call.1} parent=1 // pred_region
      %157 = dma.done [#allocation3], 32
    $region37: #{tpu_custom_call.1} parent=1 // pred_fallthru
      _
    %158 = vsyncpa [#allocation3], 1

</llo_original>
